<compile_context>
chip_gen: v6e
topology: v6e:2x2x1
jax: 0.10.0
libtpu: 0.0.40
codegen_flags: <defaults>
</compile_context>

<pallas_src>
import functools

import numpy as np
import jax
import jax.numpy as jnp
from jax.experimental import pallas as pl
from jax.experimental.pallas import tpu as pltpu

LANE = 128
_MAX_TILE_D = 2048  # lanes per D-tile: enough to hit the HBM roofline, tiny VMEM


def _soft_iou_kernel(p_ref, t_ref, inter_ref, union_ref, *,
                     tile_d, k_blocks, d_valid, needs_mask):
    k = pl.program_id(1)

    @pl.when(k == 0)
    def _zero():
        inter_ref[...] = jnp.zeros_like(inter_ref)
        union_ref[...] = jnp.zeros_like(union_ref)

    p = jax.nn.sigmoid(p_ref[...].astype(jnp.float32))
    t = t_ref[...].astype(jnp.float32)

    if needs_mask:
        # Mask lanes beyond the true reduction width D (covers both the
        # lane-padding and a partial last D-tile).
        blk = pl.program_id(0) * k_blocks + k
        col = blk * tile_d + jax.lax.broadcasted_iota(jnp.int32, p.shape, 1)
        valid = col < d_valid
        p = jnp.where(valid, p, 0.0)
        t = jnp.where(valid, t, 0.0)

    inter = p * t
    union = (p + t) - inter

    # Per-lane (VPU) fold of the tile down to 128 lanes; the cross-lane XLU
    # reduction is paid exactly once, outside the kernel.
    inter_l = inter[:, 0:LANE]
    union_l = union[:, 0:LANE]
    for j in range(1, tile_d // LANE):
        sl = slice(j * LANE, (j + 1) * LANE)
        inter_l = inter_l + inter[:, sl]
        union_l = union_l + union[:, sl]

    inter_ref[...] += inter_l
    union_ref[...] += union_l


def soft_iou_loss(pred, target, smooth=1e-6):
    """Pallas implementation of SoftIoULoss.forward (returns scalar f32)."""
    assert pred.shape == target.shape
    n = pred.shape[0]
    d = int(np.prod(pred.shape[1:]))

    pred2 = pred.reshape(n, d)
    tgt2 = target.reshape(n, d)

    # Lane-pad D to a multiple of 128 when needed; padded lanes are masked in
    # the kernel so their value is irrelevant.
    d_pad = ((d + LANE - 1) // LANE) * LANE
    if d_pad != d:
        pred2 = jnp.pad(pred2, ((0, 0), (0, d_pad - d)))
        tgt2 = jnp.pad(tgt2, ((0, 0), (0, d_pad - d)))

    tile_d = d_pad if d_pad <= _MAX_TILE_D else _MAX_TILE_D
    n_blocks = pl.cdiv(d_pad, tile_d)
    # Split the D-tiles into 2 "parallel" chunks when they divide evenly so
    # both v7x TensorCores get work; otherwise a single sequential chunk.
    p_chunks = 2 if (n_blocks >= 2 and n_blocks % 2 == 0) else 1
    k_blocks = n_blocks // p_chunks
    needs_mask = (n_blocks * tile_d != d)

    kernel = functools.partial(
        _soft_iou_kernel, tile_d=tile_d, k_blocks=k_blocks,
        d_valid=d, needs_mask=needs_mask)

    in_bytes = n * d * (pred2.dtype.itemsize + tgt2.dtype.itemsize)
    cost = pl.CostEstimate(
        flops=6 * n * d,
        transcendentals=n * d,
        bytes_accessed=in_bytes + 2 * p_chunks * n * LANE * 4)

    inter_acc, union_acc = pl.pallas_call(
        kernel,
        out_shape=(jax.ShapeDtypeStruct((p_chunks, n, LANE), jnp.float32),
                   jax.ShapeDtypeStruct((p_chunks, n, LANE), jnp.float32)),
        grid_spec=pltpu.PrefetchScalarGridSpec(
            num_scalar_prefetch=0,
            grid=(p_chunks, k_blocks),
            in_specs=[
                pl.BlockSpec((n, tile_d), lambda i, k: (0, i * k_blocks + k)),
                pl.BlockSpec((n, tile_d), lambda i, k: (0, i * k_blocks + k)),
            ],
            out_specs=[
                pl.BlockSpec((None, n, LANE), lambda i, k: (i, 0, 0)),
                pl.BlockSpec((None, n, LANE), lambda i, k: (i, 0, 0)),
            ]),
        compiler_params=pltpu.CompilerParams(
            dimension_semantics=("parallel", "arbitrary"),
            vmem_limit_bytes=32 * 1024 * 1024),
        cost_estimate=cost,
    )(pred2, tgt2)

    # Tiny epilogue in XLA: one cross-lane reduction, the IoU ratio, mean, 1-x.
    inter_sum = jnp.sum(inter_acc, axis=(0, 2))   # (n,)
    union_sum = jnp.sum(union_acc, axis=(0, 2))   # (n,)  == p_sum + t_sum - inter
    iou = (inter_sum + smooth) / (union_sum + smooth)
    return 1.0 - jnp.mean(iou)


def soft_iou_loss_ref(pred, target, smooth=1e-6):
    """Pure-JAX reference mirroring the PyTorch forward."""
    p = jax.nn.sigmoid(pred.astype(jnp.float32))
    t = target.astype(jnp.float32)
    inter = jnp.sum(p * t, axis=(1, 2, 3))
    p_sum = jnp.sum(p, axis=(1, 2, 3))
    t_sum = jnp.sum(t, axis=(1, 2, 3))
    iou = (inter + smooth) / (p_sum + t_sum - inter + smooth)
    return 1.0 - jnp.mean(iou)


if __name__ == "__main__":
    key = jax.random.PRNGKey(0)
    k1, k2, k3, k4, k5, k6 = jax.random.split(key, 6)

    # Case 1: baseline small shape (single D-tile path). D = 1024.
    pred_a = jax.random.normal(k1, (2, 4, 16, 16), dtype=jnp.float32)
    tgt_a = (jax.random.uniform(k2, (2, 4, 16, 16)) > 0.5).astype(jnp.float32)

    # Case 2: D = 4096 -> two 2048-lane tiles split into 2 parallel chunks;
    # bf16 inputs exercise the reduced-HBM-traffic path (f32 accumulation).
    pred_b = jax.random.normal(k3, (2, 4, 32, 32),
                               dtype=jnp.float32).astype(jnp.bfloat16)
    tgt_b = (jax.random.uniform(k4, (2, 4, 32, 32)) > 0.5).astype(jnp.bfloat16)

    # Case 3: D = 4800 -> lane padding + partial last tile (masked path).
    pred_c = jax.random.normal(k5, (2, 3, 40, 40), dtype=jnp.float32)
    tgt_c = (jax.random.uniform(k6, (2, 3, 40, 40)) > 0.5).astype(jnp.float32)

    for pred, tgt in ((pred_a, tgt_a), (pred_b, tgt_b), (pred_c, tgt_c)):
        got = jax.block_until_ready(soft_iou_loss(pred, tgt))
        want = jax.block_until_ready(soft_iou_loss_ref(pred, tgt))
        np.testing.assert_allclose(np.asarray(got), np.asarray(want),
                                   rtol=1e-5, atol=1e-6)

    print("KERNEL_OK")
</pallas_src>

<mosaic_0001>
module attributes {stable_mosaic.version = 11 : i64} {
  func.func @_soft_iou_kernel(%arg0: i32, %arg1: i32, %arg2: memref<2x1024xf32, #tpu.memory_space<vmem>>, %arg3: memref<2x1024xf32, #tpu.memory_space<vmem>>, %arg4: memref<1x2x128xf32, #tpu.memory_space<vmem>>, %arg5: memref<1x2x128xf32, #tpu.memory_space<vmem>>) attributes {dimension_semantics = [#tpu.dimension_semantics<parallel>, #tpu.dimension_semantics<arbitrary>], iteration_bounds = array<i64: 1, 1>, scalar_prefetch = 0 : i64, scratch_operands = 0 : i64, tpu.core_type = #tpu.core_type<tc>, window_params = [{transform_indices = @transform_0, window_bounds = array<i64: 2, 1024>}, {transform_indices = @transform_1, window_bounds = array<i64: 2, 1024>}, {transform_indices = @transform_2, window_bounds = array<i64: 1, 2, 128>}, {transform_indices = @transform_3, window_bounds = array<i64: 1, 2, 128>}]} {
    %c0_i32 = arith.constant 0 : i32
    %0 = arith.cmpi eq, %arg1, %c0_i32 : i32
    %1 = arith.extui %0 : i1 to i32
    %c0_i32_0 = arith.constant 0 : i32
    %2 = arith.cmpi ne, %1, %c0_i32_0 : i32
    scf.if %2 {
      %cst_16 = arith.constant 0.000000e+00 : f32
      %55 = vector.broadcast %cst_16 : f32 to vector<2x128xf32>
      %c0_17 = arith.constant 0 : index
      %c0_18 = arith.constant 0 : index
      %c0_19 = arith.constant 0 : index
      %56 = vector.load %arg4[%c0_17, %c0_18, %c0_19] : memref<1x2x128xf32, #tpu.memory_space<vmem>>, vector<1x2x128xf32>
      %57 = vector.shape_cast %56 : vector<1x2x128xf32> to vector<2x128xf32>
      %58 = vector.shape_cast %55 : vector<2x128xf32> to vector<1x2x128xf32>
      tpu.vector_store %arg4[%c0_17, %c0_18, %c0_19], %58 {strides = array<i32>} : memref<1x2x128xf32, #tpu.memory_space<vmem>>, vector<1x2x128xf32>,
      %cst_20 = arith.constant 0.000000e+00 : f32
      %59 = vector.broadcast %cst_20 : f32 to vector<2x128xf32>
      %c0_21 = arith.constant 0 : index
      %c0_22 = arith.constant 0 : index
      %c0_23 = arith.constant 0 : index
      %60 = vector.load %arg5[%c0_21, %c0_22, %c0_23] : memref<1x2x128xf32, #tpu.memory_space<vmem>>, vector<1x2x128xf32>
      %61 = vector.shape_cast %60 : vector<1x2x128xf32> to vector<2x128xf32>
      %62 = vector.shape_cast %59 : vector<2x128xf32> to vector<1x2x128xf32>
      tpu.vector_store %arg5[%c0_21, %c0_22, %c0_23], %62 {strides = array<i32>} : memref<1x2x128xf32, #tpu.memory_space<vmem>>, vector<1x2x128xf32>,
    } else {
    }
    %c0 = arith.constant 0 : index
    %c0_1 = arith.constant 0 : index
    %3 = vector.load %arg2[%c0, %c0_1] : memref<2x1024xf32, #tpu.memory_space<vmem>>, vector<2x1024xf32>
    %4 = arith.negf %3 : vector<2x1024xf32>
    %5 = math.exp %4 : vector<2x1024xf32>
    %cst = arith.constant 1.000000e+00 : f32
    %6 = vector.broadcast %cst : f32 to vector<2x1024xf32>
    %7 = arith.addf %6, %5 : vector<2x1024xf32>
    %8 = arith.divf %6, %7 : vector<2x1024xf32>
    %c0_2 = arith.constant 0 : index
    %c0_3 = arith.constant 0 : index
    %9 = vector.load %arg3[%c0_2, %c0_3] : memref<2x1024xf32, #tpu.memory_space<vmem>>, vector<2x1024xf32>
    %10 = arith.mulf %8, %9 : vector<2x1024xf32>
    %11 = arith.addf %8, %9 : vector<2x1024xf32>
    %12 = arith.subf %11, %10 : vector<2x1024xf32>
    %13 = vector.extract_strided_slice %10 {offsets = [0, 0], sizes = [2, 128], strides = [1, 1]} : vector<2x1024xf32> to vector<2x128xf32>
    %14 = vector.extract_strided_slice %12 {offsets = [0, 0], sizes = [2, 128], strides = [1, 1]} : vector<2x1024xf32> to vector<2x128xf32>
    %15 = vector.extract_strided_slice %10 {offsets = [0, 128], sizes = [2, 128], strides = [1, 1]} : vector<2x1024xf32> to vector<2x128xf32>
    %16 = arith.addf %13, %15 : vector<2x128xf32>
    %17 = vector.extract_strided_slice %12 {offsets = [0, 128], sizes = [2, 128], strides = [1, 1]} : vector<2x1024xf32> to vector<2x128xf32>
    %18 = arith.addf %14, %17 : vector<2x128xf32>
    %19 = vector.extract_strided_slice %10 {offsets = [0, 256], sizes = [2, 128], strides = [1, 1]} : vector<2x1024xf32> to vector<2x128xf32>
    %20 = arith.addf %16, %19 : vector<2x128xf32>
    %21 = vector.extract_strided_slice %12 {offsets = [0, 256], sizes = [2, 128], strides = [1, 1]} : vector<2x1024xf32> to vector<2x128xf32>
    %22 = arith.addf %18, %21 : vector<2x128xf32>
    %23 = vector.extract_strided_slice %10 {offsets = [0, 384], sizes = [2, 128], strides = [1, 1]} : vector<2x1024xf32> to vector<2x128xf32>
    %24 = arith.addf %20, %23 : vector<2x128xf32>
    %25 = vector.extract_strided_slice %12 {offsets = [0, 384], sizes = [2, 128], strides = [1, 1]} : vector<2x1024xf32> to vector<2x128xf32>
    %26 = arith.addf %22, %25 : vector<2x128xf32>
    %27 = vector.extract_strided_slice %10 {offsets = [0, 512], sizes = [2, 128], strides = [1, 1]} : vector<2x1024xf32> to vector<2x128xf32>
    %28 = arith.addf %24, %27 : vector<2x128xf32>
    %29 = vector.extract_strided_slice %12 {offsets = [0, 512], sizes = [2, 128], strides = [1, 1]} : vector<2x1024xf32> to vector<2x128xf32>
    %30 = arith.addf %26, %29 : vector<2x128xf32>
    %31 = vector.extract_strided_slice %10 {offsets = [0, 640], sizes = [2, 128], strides = [1, 1]} : vector<2x1024xf32> to vector<2x128xf32>
    %32 = arith.addf %28, %31 : vector<2x128xf32>
    %33 = vector.extract_strided_slice %12 {offsets = [0, 640], sizes = [2, 128], strides = [1, 1]} : vector<2x1024xf32> to vector<2x128xf32>
    %34 = arith.addf %30, %33 : vector<2x128xf32>
    %35 = vector.extract_strided_slice %10 {offsets = [0, 768], sizes = [2, 128], strides = [1, 1]} : vector<2x1024xf32> to vector<2x128xf32>
    %36 = arith.addf %32, %35 : vector<2x128xf32>
    %37 = vector.extract_strided_slice %12 {offsets = [0, 768], sizes = [2, 128], strides = [1, 1]} : vector<2x1024xf32> to vector<2x128xf32>
    %38 = arith.addf %34, %37 : vector<2x128xf32>
    %39 = vector.extract_strided_slice %10 {offsets = [0, 896], sizes = [2, 128], strides = [1, 1]} : vector<2x1024xf32> to vector<2x128xf32>
    %40 = arith.addf %36, %39 : vector<2x128xf32>
    %41 = vector.extract_strided_slice %12 {offsets = [0, 896], sizes = [2, 128], strides = [1, 1]} : vector<2x1024xf32> to vector<2x128xf32>
    %42 = arith.addf %38, %41 : vector<2x128xf32>
    %c0_4 = arith.constant 0 : index
    %c0_5 = arith.constant 0 : index
    %c0_6 = arith.constant 0 : index
    %43 = vector.load %arg4[%c0_4, %c0_5, %c0_6] : memref<1x2x128xf32, #tpu.memory_space<vmem>>, vector<1x2x128xf32>
    %44 = vector.shape_cast %43 : vector<1x2x128xf32> to vector<2x128xf32>
    %45 = arith.addf %44, %40 : vector<2x128xf32>
    %c0_7 = arith.constant 0 : index
    %c0_8 = arith.constant 0 : index
    %c0_9 = arith.constant 0 : index
    %46 = vector.load %arg4[%c0_7, %c0_8, %c0_9] : memref<1x2x128xf32, #tpu.memory_space<vmem>>, vector<1x2x128xf32>
    %47 = vector.shape_cast %46 : vector<1x2x128xf32> to vector<2x128xf32>
    %48 = vector.shape_cast %45 : vector<2x128xf32> to vector<1x2x128xf32>
    tpu.vector_store %arg4[%c0_7, %c0_8, %c0_9], %48 {strides = array<i32>} : memref<1x2x128xf32, #tpu.memory_space<vmem>>, vector<1x2x128xf32>,
    %c0_10 = arith.constant 0 : index
    %c0_11 = arith.constant 0 : index
    %c0_12 = arith.constant 0 : index
    %49 = vector.load %arg5[%c0_10, %c0_11, %c0_12] : memref<1x2x128xf32, #tpu.memory_space<vmem>>, vector<1x2x128xf32>
    %50 = vector.shape_cast %49 : vector<1x2x128xf32> to vector<2x128xf32>
    %51 = arith.addf %50, %42 : vector<2x128xf32>
    %c0_13 = arith.constant 0 : index
    %c0_14 = arith.constant 0 : index
    %c0_15 = arith.constant 0 : index
    %52 = vector.load %arg5[%c0_13, %c0_14, %c0_15] : memref<1x2x128xf32, #tpu.memory_space<vmem>>, vector<1x2x128xf32>
    %53 = vector.shape_cast %52 : vector<1x2x128xf32> to vector<2x128xf32>
    %54 = vector.shape_cast %51 : vector<2x128xf32> to vector<1x2x128xf32>
    tpu.vector_store %arg5[%c0_13, %c0_14, %c0_15], %54 {strides = array<i32>} : memref<1x2x128xf32, #tpu.memory_space<vmem>>, vector<1x2x128xf32>,
    return
  }
  func.func @transform_0(%arg0: i32, %arg1: i32) -> (i32, i32) {
    %c1_i32 = arith.constant 1 : i32
    %0 = arith.muli %arg0, %c1_i32 : i32
    %1 = arith.addi %0, %arg1 : i32
    %c0_i32 = arith.constant 0 : i32
    %c0_i32_0 = arith.constant 0 : i32
    return %c0_i32, %1 : i32, i32
  }
  func.func @transform_1(%arg0: i32, %arg1: i32) -> (i32, i32) {
    %c1_i32 = arith.constant 1 : i32
    %0 = arith.muli %arg0, %c1_i32 : i32
    %1 = arith.addi %0, %arg1 : i32
    %c0_i32 = arith.constant 0 : i32
    %c0_i32_0 = arith.constant 0 : i32
    return %c0_i32, %1 : i32, i32
  }
  func.func @transform_2(%arg0: i32, %arg1: i32) -> (i32, i32, i32) {
    %c0_i32 = arith.constant 0 : i32
    %c0_i32_0 = arith.constant 0 : i32
    %c0_i32_1 = arith.constant 0 : i32
    return %arg0, %c0_i32, %c0_i32_0 : i32, i32, i32
  }
  func.func @transform_3(%arg0: i32, %arg1: i32) -> (i32, i32, i32) {
    %c0_i32 = arith.constant 0 : i32
    %c0_i32_0 = arith.constant 0 : i32
    %c0_i32_1 = arith.constant 0 : i32
    return %arg0, %c0_i32, %c0_i32_0 : i32, i32, i32
  }
}

</mosaic_0001>

<llo_original>
// kernel: tpu_custom_call.1
$region0: #{tpu_custom_call.1}
  #allocation0 [shape = 'u32[]', space=smem, size = 0x4, offset = 0x4, fixed_abs, tag = 'smem constant byte address 0x4 - core index']
  #allocation1 [shape = 'u32[144,128]{1,0:T(1,128)}', space=vmem, size = 0x12000, scoped, tag = 'internal scratch']
  %s0 = inlined_call_operand.hbm [shape: f32[2,1024], index: 0, kind: input, shape index: {}]
  %s1 = inlined_call_operand.hbm [shape: f32[2,1024], index: 1, kind: input, shape index: {}]
  %s2 = inlined_call_operand.hbm [shape: f32[1,2,128], index: 2, kind: output, shape index: {0}]
  %s3 = inlined_call_operand.hbm [shape: f32[1,2,128], index: 3, kind: output, shape index: {1}]
  %4 = xla_tuple %s2, %s3
  %s5 = sld [smem:[#allocation0]]
  $region38: #{tpu_custom_call.1} parent=0
    _
  %s7 = ssub.s32 1, %s5
  %s8 = scalar_select 0, %s7, %s5
  $region1: #{tpu_custom_call.1} parent=0
    #allocation2 [shape = 'u8[8192]{0}', space=vmem, size = 0x2000, scoped, tag = 'input window, operand 0, single buffered']
    #allocation3 [shape = 's32[1]{0}', space=sflag, size = 0x4, scoped, tag = 'scoped memory for tpu_custom_call.1']
    #allocation4 [shape = 's32[1]{0}', space=sflag, size = 0x4, scoped, tag = 'scoped memory for tpu_custom_call.1']
    #allocation5 [shape = 'u8[8192]{0}', space=vmem, size = 0x2000, scoped, tag = 'input window, operand 1, single buffered']
    #allocation6 [shape = 's32[1]{0}', space=sflag, size = 0x4, scoped, tag = 'scoped memory for tpu_custom_call.1']
    #allocation7 [shape = 'u8[1024]{0}', space=vmem, size = 0x400, scoped, tag = 'output window, operand 0, single buffered']
    #allocation8 [shape = 'u8[1024]{0}', space=vmem, size = 0x400, scoped, tag = 'output window, operand 1, single buffered']
    #allocation9 [shape = 's32[1]{0}', space=sflag, size = 0x4, scoped, tag = 'scoped memory for tpu_custom_call.1']
    %9 = vsyncpa [#allocation3], 0
    %10 = vsyncpa [#allocation6], 0
    %11 = vsyncpa [#allocation4], 0
    %12 = vsyncpa [#allocation9], 0
    // Predicated region
    $region2: #{tpu_custom_call.1} parent=1 // pred_check
      _
    $region3: #{tpu_custom_call.1} parent=1 // pred_check_branch
      %14 = sbr.rel (0) target = $region5
    $region4: #{tpu_custom_call.1} parent=1 // pred_region
      %s15 = sadd.s32 0, 0
      %s16 = smul.u32 8, %s15
      %s18 = ssub.s32 256, 256
      %19 = vsyncadd [#allocation3], %s18
      %s20 = smul.addr %s16, 32
      %s21 = scalar_lea.hbm %s0, %s20
      %s23 = sshll.u32 [#allocation2], 4
      %s24 = int_to_ptr.vmem [resolvable:$true] %s23
      %26 = dma.hbm_to_vmem [thread:$0]  %s21, 256, %s24, [#allocation3]
    $region5: #{tpu_custom_call.1} parent=1 // pred_fallthru
      _
    // Predicated region
    $region6: #{tpu_custom_call.1} parent=1 // pred_check
      _
    $region7: #{tpu_custom_call.1} parent=1 // pred_check_branch
      %28 = sbr.rel (0) target = $region9
    $region8: #{tpu_custom_call.1} parent=1 // pred_region
      %s29 = sadd.s32 0, 0
      %s30 = smul.u32 8, %s29
      %s32 = ssub.s32 256, 256
      %33 = vsyncadd [#allocation6], %s32
      %s34 = smul.addr %s30, 32
      %s35 = scalar_lea.hbm %s1, %s34
      %s37 = sshll.u32 [#allocation5], 4
      %s38 = int_to_ptr.vmem [resolvable:$true] %s37
      %40 = dma.hbm_to_vmem [thread:$0]  %s35, 256, %s38, [#allocation6]
    $region9: #{tpu_custom_call.1} parent=1 // pred_fallthru
      _
    // Predicated region
    $region10: #{tpu_custom_call.1} parent=1 // pred_check
      _
    $region11: #{tpu_custom_call.1} parent=1 // pred_check_branch
      %42 = sbr.rel (0) target = $region13
    $region12: #{tpu_custom_call.1} parent=1 // pred_region
      %43 = dma.done [#allocation3], 256
    $region13: #{tpu_custom_call.1} parent=1 // pred_fallthru
      _
    // Predicated region
    $region14: #{tpu_custom_call.1} parent=1 // pred_check
      _
    $region15: #{tpu_custom_call.1} parent=1 // pred_check_branch
      %45 = sbr.rel (0) target = $region17
    $region16: #{tpu_custom_call.1} parent=1 // pred_region
      %46 = dma.done [#allocation6], 256
    $region17: #{tpu_custom_call.1} parent=1 // pred_fallthru
      _
    %s47 = sadd.s32 0, 0
    %s48 = smul.u32 8, %s47
    %s49 = sadd.s32 0, 0
    %s50 = smul.u32 8, %s49
    %p51 = scmp.eq.s32.totalorder 0, 0
    // Predicated region
    $region18: #{tpu_custom_call.1} parent=1 // pred_check
      %p52 = pneg %p51
    $region19: #{tpu_custom_call.1} parent=1 // pred_check_branch
      %54 = sbr.rel (%p52) target = $region21
    $region20: #{tpu_custom_call.1} parent=1 // pred_region
      %55 = vst [vmem:[#allocation7] sm:$0x3] 0.0
      %56 = vst [vmem:[#allocation8] sm:$0x3] 0.0
    $region21: #{tpu_custom_call.1} parent=1 // pred_fallthru
      _
    %v57 = vld [vmem:[#allocation2] sm:$0xff]
    %v58 = vld [vmem:[#allocation2 + $0x8] sm:$0xff]
    %v59 = vxor.u32 %v57, 2147483648
    %v60 = vxor.u32 %v58, 2147483648
    %v61 = vmul.f32 %v59, 1.442695
    %v62 = vpow.pop %v61
    %v63 = vmul.f32 %v60, 1.442695
    %v64 = vpow.pop %v63
    %v65 = vadd.f32 %v62, 1.0
    %v66 = vadd.f32 %v64, 1.0
    %v67 = vrcp.pop %v65
    %v68 = vmul.f32 1.0, %v67
    %v69 = vrcp.pop %v66
    %v70 = vmul.f32 1.0, %v69
    %v71 = vld [vmem:[#allocation5] sm:$0xff]
    %v72 = vld [vmem:[#allocation5 + $0x8] sm:$0xff]
    %v73 = vmul.f32 %v68, %v71
    %v74 = vmul.f32 %v70, %v72
    %v75 = vadd.f32 %v68, %v71
    %v76 = vadd.f32 %v70, %v72
    %v77 = vsub.f32 %v75, %v73
    %v78 = vsub.f32 %v76, %v74
    %v80 = vrot.slane %v73, 2
    %v82 = vadd.f32 %v73, %v80
    %v84 = vrot.slane %v77, 2
    %v86 = vadd.f32 %v77, %v84
    %v87 = vrot.slane %v73, 4
    %v89 = vadd.f32 %v82, %v87
    %v90 = vrot.slane %v77, 4
    %v92 = vadd.f32 %v86, %v90
    %v93 = vrot.slane %v73, 6
    %v95 = vadd.f32 %v89, %v93
    %v96 = vrot.slane %v77, 6
    %v98 = vadd.f32 %v92, %v96
    %v99 = vadd.f32 %v95, %v74
    %v100 = vadd.f32 %v98, %v78
    %v102 = vrot.slane %v74, 2
    %v104 = vadd.f32 %v99, %v102
    %v106 = vrot.slane %v78, 2
    %v108 = vadd.f32 %v100, %v106
    %v109 = vrot.slane %v74, 4
    %v111 = vadd.f32 %v104, %v109
    %v112 = vrot.slane %v78, 4
    %v114 = vadd.f32 %v108, %v112
    %v115 = vrot.slane %v74, 6
    %v117 = vadd.f32 %v111, %v115
    %v118 = vrot.slane %v78, 6
    %v120 = vadd.f32 %v114, %v118
    %v121 = vld [vmem:[#allocation7] sm:$0x3]
    %v122 = vadd.f32 %v121, %v117
    %123 = vst [vmem:[#allocation7] sm:$0x3] %v122
    %v124 = vld [vmem:[#allocation8] sm:$0x3]
    %v125 = vadd.f32 %v124, %v120
    %126 = vst [vmem:[#allocation8] sm:$0x3] %v125
    // Predicated region
    $region22: #{tpu_custom_call.1} parent=1 // pred_check
      _
    $region23: #{tpu_custom_call.1} parent=1 // pred_check_branch
      %128 = sbr.rel (0) target = $region25
    $region24: #{tpu_custom_call.1} parent=1 // pred_region
      %s130 = ssub.s32 32, 32
      %131 = vsyncadd [#allocation4], %s130
      %s133 = sshll.u32 [#allocation7], 4
      %s134 = int_to_ptr.vmem [resolvable:$true] %s133
      %136 = dma.vmem_to_hbm [thread:$0]  %s134, 32, %s2, [#allocation4]
    $region25: #{tpu_custom_call.1} parent=1 // pred_fallthru
      _
    // Predicated region
    $region26: #{tpu_custom_call.1} parent=1 // pred_check
      _
    $region27: #{tpu_custom_call.1} parent=1 // pred_check_branch
      %138 = sbr.rel (0) target = $region29
    $region28: #{tpu_custom_call.1} parent=1 // pred_region
      %s140 = ssub.s32 32, 32
      %141 = vsyncadd [#allocation9], %s140
      %s143 = sshll.u32 [#allocation8], 4
      %s144 = int_to_ptr.vmem [resolvable:$true] %s143
      %146 = dma.vmem_to_hbm [thread:$0]  %s144, 32, %s3, [#allocation9]
    $region29: #{tpu_custom_call.1} parent=1 // pred_fallthru
      _
    // Predicated region
    $region30: #{tpu_custom_call.1} parent=1 // pred_check
      _
    $region31: #{tpu_custom_call.1} parent=1 // pred_check_branch
      %148 = sbr.rel (0) target = $region33
    $region32: #{tpu_custom_call.1} parent=1 // pred_region
      %149 = dma.done [#allocation4], 32
    $region33: #{tpu_custom_call.1} parent=1 // pred_fallthru
      _
    // Predicated region
    $region34: #{tpu_custom_call.1} parent=1 // pred_check
      _
    $region35: #{tpu_custom_call.1} parent=1 // pred_check_branch
      %151 = sbr.rel (0) target = $region37
    $region36: #{tpu_custom_call.1} parent=1 // pred_region
      %152 = dma.done [#allocation9], 32
    $region37: #{tpu_custom_call.1} parent=1 // pred_fallthru
      _
    %153 = vsyncpa [#allocation3], 1
    %154 = vsyncpa [#allocation6], 1
    %155 = vsyncpa [#allocation4], 1
    %156 = vsyncpa [#allocation9], 1

</llo_original>
